<compile_context>
chip_gen: v7x
topology: tpu7x:2x2x1
jax: 0.10.0
libtpu: 0.0.40
codegen_flags: <defaults>
</compile_context>

<pallas_src>
import jax
import jax.numpy as jnp
from jax import lax
from jax.experimental import pallas as pl
from jax.experimental.pallas import tpu as pltpu

NUM_CLASSES = 8
LANES = 128  # lane-dense padding of the class dimension


# ---------------------------------------------------------------------------
# Fused Pallas kernel: two linear heads + evidential uncertainty fusion
# ---------------------------------------------------------------------------
def _softplus(x):
    # matches torch.nn.functional.softplus (beta=1, threshold=20)
    return jnp.where(x > 20.0, x, jnp.log1p(jnp.exp(jnp.minimum(x, 20.0))))


def _ratio_uncertainty(o, valid, col):
    """u = p_top2 / p_top1 with p = alpha / sum(alpha).

    The sum cancels in the ratio, so we take the top-2 directly on alpha and skip
    the sum reduction and the alpha/s divide (fewer XLU ops, no divide).
    """
    alpha = jnp.where(valid, _softplus(o) + 1.0, 0.0)      # alpha > 1 on valid lanes
    top1 = jnp.max(alpha, axis=-1, keepdims=True)
    # exclude exactly one (the first) occurrence of the max, like torch.topk(2)
    is_max = alpha >= top1                                  # padded lanes (==0) never hit
    first_idx = jnp.min(jnp.where(is_max, col, LANES), axis=-1, keepdims=True)
    second = jnp.max(jnp.where(col == first_idx, -1.0, alpha), axis=-1, keepdims=True)
    # top1 >= 1, well conditioned; EUP approximate reciprocal is near-free
    return second * pl.reciprocal(top1, approx=True)


def _emc_kernel(xt_ref, wt_ref, bt_ref, xi_ref, wi_ref, bi_ref,
                to_ref, io_ref, oa_ref):
    # --- classifier heads: bf16 MXU matmul, f32 accumulate, f32 bias add ---
    t = jnp.dot(xt_ref[...], wt_ref[...],
                preferred_element_type=jnp.float32) + bt_ref[...]
    im = jnp.dot(xi_ref[...], wi_ref[...],
                 preferred_element_type=jnp.float32) + bi_ref[...]
    to_ref[...] = t
    io_ref[...] = im

    # --- evidential fusion on lane-padded logits (mask the padded class lanes) ---
    col = lax.broadcasted_iota(jnp.int32, t.shape, 1)
    valid = col < NUM_CLASSES
    u_t = _ratio_uncertainty(t, valid, col)
    u_i = _ratio_uncertainty(im, valid, col)
    w_t = 1.0 - u_t
    w_i = 1.0 - u_i
    # relative weighting: w / w.sum(over modalities).  If both modalities are
    # maximally uncertain (u==1) this divides by zero -> NaN, matching torch.
    inv_ws = pl.reciprocal(w_t + w_i, approx=True)
    oa_ref[...] = t * (w_t * inv_ws) + im * (w_i * inv_ws)


def _pad_classes(w, b):
    d, c = w.shape
    w_p = jnp.pad(w, ((0, 0), (0, LANES - c))).astype(jnp.bfloat16)
    b_p = jnp.pad(b, (0, LANES - c)).astype(jnp.float32).reshape(1, LANES)
    return w_p, b_p


def emc_fused_heads(txt_feat, img_flat, w_txt, b_txt, w_img, b_img):
    """Single pallas_call producing (txt_out, img_out, fused), classes sliced back."""
    b_sz, d_txt = txt_feat.shape
    _, d_img = img_flat.shape
    c = w_txt.shape[1]

    wt_p, bt_p = _pad_classes(w_txt, b_txt)
    wi_p, bi_p = _pad_classes(w_img, b_img)
    xt = txt_feat.astype(jnp.bfloat16)
    xi = img_flat.astype(jnp.bfloat16)

    vmem = lambda: pl.BlockSpec(memory_space=pltpu.MemorySpace.VMEM)
    cost = pl.CostEstimate(
        flops=2 * b_sz * (d_txt + d_img) * LANES,
        transcendentals=2 * b_sz * LANES + 3 * b_sz,
        bytes_accessed=(xt.size + wt_p.size + xi.size + wi_p.size) * 2
        + (bt_p.size + bi_p.size + 3 * b_sz * LANES) * 4,
    )

    txt_out_p, img_out_p, fused_p = pl.pallas_call(
        _emc_kernel,
        out_shape=(
            jax.ShapeDtypeStruct((b_sz, LANES), jnp.float32),
            jax.ShapeDtypeStruct((b_sz, LANES), jnp.float32),
            jax.ShapeDtypeStruct((b_sz, LANES), jnp.float32),
        ),
        in_specs=[vmem() for _ in range(6)],
        out_specs=(vmem(), vmem(), vmem()),
        cost_estimate=cost,
    )(xt, wt_p, bt_p, xi, wi_p, bi_p)

    return txt_out_p[:, :c], img_out_p[:, :c], fused_p[:, :c]


# ---------------------------------------------------------------------------
# EMC forward (glue in plain JAX, compute in the fused Pallas kernel)
# ---------------------------------------------------------------------------
def emc_forward(params, txt, mask, segment, img):
    del segment  # unused (see TODO above)
    # text "classifier": embedding lookup + masked mean pool
    emb = jnp.take(params["txt_emb"], txt, axis=0)                  # [B, T, D]
    m = mask[..., None].astype(jnp.float32)
    txt_feat = (emb * m).sum(1) / jnp.maximum(m.sum(1), 1.0)        # [B, D]

    # image "classifier": flatten NCHW
    b_sz = img.shape[0]
    img_flat = img.reshape(b_sz, -1).astype(jnp.float32)            # [B, C*H*W]

    txt_out, img_out, out_a = emc_fused_heads(
        txt_feat, img_flat,
        params["w_txt"], params["b_txt"], params["w_img"], params["b_img"])

    txt_img_out = jnp.stack([txt_out, img_out], axis=0)             # [2, B, C]
    return txt_img_out, out_a


# ---------------------------------------------------------------------------
# Pure-JAX f32 reference (mirrors the torch functions) for a correctness check
# ---------------------------------------------------------------------------
def _ref_forward(params, txt, mask, segment, img):
    emb = jnp.take(params["txt_emb"], txt, axis=0)
    m = mask[..., None].astype(jnp.float32)
    txt_feat = (emb * m).sum(1) / jnp.maximum(m.sum(1), 1.0)
    txt_out = txt_feat @ params["w_txt"] + params["b_txt"]
    img_out = img.reshape(img.shape[0], -1) @ params["w_img"] + params["b_img"]
    out = jnp.stack([txt_out, img_out], 0)
    alpha = jax.nn.softplus(out) + 1.0
    p = alpha / alpha.sum(-1, keepdims=True)
    pk = -jnp.sort(-p, axis=-1)[..., :2]
    u = (pk[:, :, 1] / pk[:, :, 0])[..., None]
    w = 1.0 - u
    w = w / w.sum(0, keepdims=True)
    out_a = (out * w).sum(0)
    return out, out_a


if __name__ == "__main__":
    B, T, VOCAB, D_TXT = 8, 8, 50, 32
    C_IMG, H, W = 4, 16, 16
    D_IMG = C_IMG * H * W

    key = jax.random.PRNGKey(0)
    k_emb, k_wt, k_wi, k_txt, k_img = jax.random.split(key, 5)

    params = {
        "txt_emb": 0.1 * jax.random.normal(k_emb, (VOCAB, D_TXT), jnp.float32),
        "w_txt": 0.1 * jax.random.normal(k_wt, (D_TXT, NUM_CLASSES), jnp.float32),
        "b_txt": jnp.linspace(-0.1, 0.1, NUM_CLASSES, dtype=jnp.float32),
        "w_img": 0.05 * jax.random.normal(k_wi, (D_IMG, NUM_CLASSES), jnp.float32),
        "b_img": jnp.linspace(0.1, -0.1, NUM_CLASSES, dtype=jnp.float32),
    }

    txt = jax.random.randint(k_txt, (B, T), 0, VOCAB, dtype=jnp.int32)
    mask = jnp.ones((B, T), jnp.float32)
    segment = jnp.zeros((B, T), jnp.int32)
    img = jax.random.normal(k_img, (B, C_IMG, H, W), jnp.float32)  # NCHW

    out, out_a = emc_forward(params, txt, mask, segment, img)
    out = jax.block_until_ready(out)
    out_a = jax.block_until_ready(out_a)

    ref_out, ref_out_a = _ref_forward(params, txt, mask, segment, img)
    assert out.shape == (2, B, NUM_CLASSES) and out_a.shape == (B, NUM_CLASSES)
    # loose tolerance: kernel uses bf16 MXU inputs + EUP approximate reciprocals
    assert jnp.allclose(out, ref_out, atol=5e-2, rtol=5e-2)
    assert jnp.allclose(out_a, ref_out_a, atol=5e-2, rtol=5e-2)

    print("KERNEL_OK")
</pallas_src>

<mosaic_0001>
module attributes {stable_mosaic.version = 11 : i64} {
  func.func @_emc_kernel(%arg0: memref<8x32xbf16, #tpu.memory_space<vmem>>, %arg1: memref<32x128xbf16, #tpu.memory_space<vmem>>, %arg2: memref<1x128xf32, #tpu.memory_space<vmem>>, %arg3: memref<8x1024xbf16, #tpu.memory_space<vmem>>, %arg4: memref<1024x128xbf16, #tpu.memory_space<vmem>>, %arg5: memref<1x128xf32, #tpu.memory_space<vmem>>, %arg6: memref<8x128xf32, #tpu.memory_space<vmem>>, %arg7: memref<8x128xf32, #tpu.memory_space<vmem>>, %arg8: memref<8x128xf32, #tpu.memory_space<vmem>>) attributes {dimension_semantics = [], scalar_prefetch = 0 : i64, scratch_operands = 0 : i64, tpu.core_type = #tpu.core_type<tc>} {
    %c0 = arith.constant 0 : index
    %c0_0 = arith.constant 0 : index
    %0 = vector.load %arg0[%c0, %c0_0] : memref<8x32xbf16, #tpu.memory_space<vmem>>, vector<8x32xbf16>
    %c0_1 = arith.constant 0 : index
    %c0_2 = arith.constant 0 : index
    %1 = vector.load %arg1[%c0_1, %c0_2] : memref<32x128xbf16, #tpu.memory_space<vmem>>, vector<32x128xbf16>
    %cst = arith.constant dense<0.000000e+00> : vector<8x128xf32>
    %2 = tpu.matmul %0, %1, %cst {dimension_numbers = #tpu.dot_dimension_numbers<[1], [0], [0], [1], [0, 0, 1, 1], [], []>} : vector<8x32xbf16>, vector<32x128xbf16>, vector<8x128xf32> -> vector<8x128xf32>
    %c0_3 = arith.constant 0 : index
    %c0_4 = arith.constant 0 : index
    %3 = vector.load %arg2[%c0_3, %c0_4] : memref<1x128xf32, #tpu.memory_space<vmem>>, vector<1x128xf32>
    %4 = vector.broadcast %3 : vector<1x128xf32> to vector<8x128xf32>
    %5 = arith.addf %2, %4 : vector<8x128xf32>
    %c0_5 = arith.constant 0 : index
    %c0_6 = arith.constant 0 : index
    %6 = vector.load %arg3[%c0_5, %c0_6] : memref<8x1024xbf16, #tpu.memory_space<vmem>>, vector<8x1024xbf16>
    %c0_7 = arith.constant 0 : index
    %c0_8 = arith.constant 0 : index
    %7 = vector.load %arg4[%c0_7, %c0_8] : memref<1024x128xbf16, #tpu.memory_space<vmem>>, vector<1024x128xbf16>
    %cst_9 = arith.constant dense<0.000000e+00> : vector<8x128xf32>
    %8 = tpu.matmul %6, %7, %cst_9 {dimension_numbers = #tpu.dot_dimension_numbers<[1], [0], [0], [1], [0, 0, 1, 1], [], []>} : vector<8x1024xbf16>, vector<1024x128xbf16>, vector<8x128xf32> -> vector<8x128xf32>
    %c0_10 = arith.constant 0 : index
    %c0_11 = arith.constant 0 : index
    %9 = vector.load %arg5[%c0_10, %c0_11] : memref<1x128xf32, #tpu.memory_space<vmem>>, vector<1x128xf32>
    %10 = vector.broadcast %9 : vector<1x128xf32> to vector<8x128xf32>
    %11 = arith.addf %8, %10 : vector<8x128xf32>
    %c0_12 = arith.constant 0 : index
    %c0_13 = arith.constant 0 : index
    %12 = vector.load %arg6[%c0_12, %c0_13] : memref<8x128xf32, #tpu.memory_space<vmem>>, vector<8x128xf32>
    tpu.vector_store %arg6[%c0_12, %c0_13], %5 {strides = array<i32>} : memref<8x128xf32, #tpu.memory_space<vmem>>, vector<8x128xf32>,
    %c0_14 = arith.constant 0 : index
    %c0_15 = arith.constant 0 : index
    %13 = vector.load %arg7[%c0_14, %c0_15] : memref<8x128xf32, #tpu.memory_space<vmem>>, vector<8x128xf32>
    tpu.vector_store %arg7[%c0_14, %c0_15], %11 {strides = array<i32>} : memref<8x128xf32, #tpu.memory_space<vmem>>, vector<8x128xf32>,
    %14 = tpu.iota {dimensions = array<i32: 1>} : vector<8x128xi32>
    %c8_i32 = arith.constant 8 : i32
    %15 = vector.broadcast %c8_i32 : i32 to vector<8x128xi32>
    %16 = arith.cmpi slt, %14, %15 : vector<8x128xi32>
    %cst_16 = arith.constant 2.000000e+01 : f32
    %17 = vector.broadcast %cst_16 : f32 to vector<8x128xf32>
    %18 = arith.cmpf ogt, %5, %17 : vector<8x128xf32>
    %cst_17 = arith.constant 2.000000e+01 : f32
    %19 = vector.broadcast %cst_17 : f32 to vector<8x128xf32>
    %20 = arith.minimumf %5, %19 : vector<8x128xf32>
    %21 = math.exp %20 : vector<8x128xf32>
    %22 = math.log1p %21 : vector<8x128xf32>
    %23 = arith.select %18, %5, %22 : vector<8x128xi1>, vector<8x128xf32>
    %cst_18 = arith.constant 1.000000e+00 : f32
    %24 = vector.broadcast %cst_18 : f32 to vector<8x128xf32>
    %25 = arith.addf %23, %24 : vector<8x128xf32>
    %cst_19 = arith.constant 0.000000e+00 : f32
    %26 = vector.broadcast %cst_19 : f32 to vector<8x128xf32>
    %27 = arith.select %16, %25, %26 : vector<8x128xi1>, vector<8x128xf32>
    %cst_20 = arith.constant dense<0xFF800000> : vector<8xf32>
    %28 = vector.multi_reduction <maximumf>, %27, %cst_20 [1] : vector<8x128xf32> to vector<8xf32>
    %29 = vector.shape_cast %28 : vector<8xf32> to vector<8x1xf32>
    %30 = vector.broadcast %29 : vector<8x1xf32> to vector<8x128xf32>
    %31 = arith.cmpf oge, %27, %30 : vector<8x128xf32>
    %c128_i32 = arith.constant 128 : i32
    %32 = vector.broadcast %c128_i32 : i32 to vector<8x128xi32>
    %33 = arith.select %31, %14, %32 : vector<8x128xi1>, vector<8x128xi32>
    %cst_21 = arith.constant dense<2147483647> : vector<8xi32>
    %34 = vector.multi_reduction <minsi>, %33, %cst_21 [1] : vector<8x128xi32> to vector<8xi32>
    %35 = vector.shape_cast %34 : vector<8xi32> to vector<8x1xi32>
    %36 = vector.broadcast %35 : vector<8x1xi32> to vector<8x128xi32>
    %37 = arith.cmpi eq, %14, %36 : vector<8x128xi32>
    %cst_22 = arith.constant -1.000000e+00 : f32
    %38 = vector.broadcast %cst_22 : f32 to vector<8x128xf32>
    %39 = arith.select %37, %38, %27 : vector<8x128xi1>, vector<8x128xf32>
    %cst_23 = arith.constant dense<0xFF800000> : vector<8xf32>
    %40 = vector.multi_reduction <maximumf>, %39, %cst_23 [1] : vector<8x128xf32> to vector<8xf32>
    %41 = vector.shape_cast %40 : vector<8xf32> to vector<8x1xf32>
    %42 = tpu.reciprocal %29 {approx = true} : vector<8x1xf32> -> vector<8x1xf32>
    %43 = arith.mulf %41, %42 : vector<8x1xf32>
    %cst_24 = arith.constant 2.000000e+01 : f32
    %44 = vector.broadcast %cst_24 : f32 to vector<8x128xf32>
    %45 = arith.cmpf ogt, %11, %44 : vector<8x128xf32>
    %cst_25 = arith.constant 2.000000e+01 : f32
    %46 = vector.broadcast %cst_25 : f32 to vector<8x128xf32>
    %47 = arith.minimumf %11, %46 : vector<8x128xf32>
    %48 = math.exp %47 : vector<8x128xf32>
    %49 = math.log1p %48 : vector<8x128xf32>
    %50 = arith.select %45, %11, %49 : vector<8x128xi1>, vector<8x128xf32>
    %cst_26 = arith.constant 1.000000e+00 : f32
    %51 = vector.broadcast %cst_26 : f32 to vector<8x128xf32>
    %52 = arith.addf %50, %51 : vector<8x128xf32>
    %cst_27 = arith.constant 0.000000e+00 : f32
    %53 = vector.broadcast %cst_27 : f32 to vector<8x128xf32>
    %54 = arith.select %16, %52, %53 : vector<8x128xi1>, vector<8x128xf32>
    %cst_28 = arith.constant dense<0xFF800000> : vector<8xf32>
    %55 = vector.multi_reduction <maximumf>, %54, %cst_28 [1] : vector<8x128xf32> to vector<8xf32>
    %56 = vector.shape_cast %55 : vector<8xf32> to vector<8x1xf32>
    %57 = vector.broadcast %56 : vector<8x1xf32> to vector<8x128xf32>
    %58 = arith.cmpf oge, %54, %57 : vector<8x128xf32>
    %c128_i32_29 = arith.constant 128 : i32
    %59 = vector.broadcast %c128_i32_29 : i32 to vector<8x128xi32>
    %60 = arith.select %58, %14, %59 : vector<8x128xi1>, vector<8x128xi32>
    %cst_30 = arith.constant dense<2147483647> : vector<8xi32>
    %61 = vector.multi_reduction <minsi>, %60, %cst_30 [1] : vector<8x128xi32> to vector<8xi32>
    %62 = vector.shape_cast %61 : vector<8xi32> to vector<8x1xi32>
    %63 = vector.broadcast %62 : vector<8x1xi32> to vector<8x128xi32>
    %64 = arith.cmpi eq, %14, %63 : vector<8x128xi32>
    %cst_31 = arith.constant -1.000000e+00 : f32
    %65 = vector.broadcast %cst_31 : f32 to vector<8x128xf32>
    %66 = arith.select %64, %65, %54 : vector<8x128xi1>, vector<8x128xf32>
    %cst_32 = arith.constant dense<0xFF800000> : vector<8xf32>
    %67 = vector.multi_reduction <maximumf>, %66, %cst_32 [1] : vector<8x128xf32> to vector<8xf32>
    %68 = vector.shape_cast %67 : vector<8xf32> to vector<8x1xf32>
    %69 = tpu.reciprocal %56 {approx = true} : vector<8x1xf32> -> vector<8x1xf32>
    %70 = arith.mulf %68, %69 : vector<8x1xf32>
    %cst_33 = arith.constant 1.000000e+00 : f32
    %71 = vector.broadcast %cst_33 : f32 to vector<8x1xf32>
    %72 = arith.subf %71, %43 : vector<8x1xf32>
    %cst_34 = arith.constant 1.000000e+00 : f32
    %73 = vector.broadcast %cst_34 : f32 to vector<8x1xf32>
    %74 = arith.subf %73, %70 : vector<8x1xf32>
    %75 = arith.addf %72, %74 : vector<8x1xf32>
    %76 = tpu.reciprocal %75 {approx = true} : vector<8x1xf32> -> vector<8x1xf32>
    %77 = arith.mulf %72, %76 : vector<8x1xf32>
    %78 = vector.broadcast %77 : vector<8x1xf32> to vector<8x128xf32>
    %79 = arith.mulf %5, %78 : vector<8x128xf32>
    %80 = arith.mulf %74, %76 : vector<8x1xf32>
    %81 = vector.broadcast %80 : vector<8x1xf32> to vector<8x128xf32>
    %82 = arith.mulf %11, %81 : vector<8x128xf32>
    %83 = arith.addf %79, %82 : vector<8x128xf32>
    %c0_35 = arith.constant 0 : index
    %c0_36 = arith.constant 0 : index
    %84 = vector.load %arg8[%c0_35, %c0_36] : memref<8x128xf32, #tpu.memory_space<vmem>>, vector<8x128xf32>
    tpu.vector_store %arg8[%c0_35, %c0_36], %83 {strides = array<i32>} : memref<8x128xf32, #tpu.memory_space<vmem>>, vector<8x128xf32>,
    return
  }
}

</mosaic_0001>

<llo_original>
// kernel: tpu_custom_call.1
$region0: #{tpu_custom_call.1}
  #allocation0 [shape = 'u32[]', space=smem, size = 0x4, offset = 0x4, fixed_abs, tag = 'smem constant byte address 0x4 - core index']
  #allocation1 [shape = 'u32[144,128]{1,0:T(1,128)}', space=vmem, size = 0x12000, scoped, tag = 'internal scratch']
  %s0 = inlined_call_operand.hbm [shape: bf16[8,32], index: 0, kind: input, shape index: {}]
  %s1 = inlined_call_operand.hbm [shape: bf16[32,128], index: 1, kind: input, shape index: {}]
  %s2 = inlined_call_operand.vmem [shape: f32[1,128], index: 2, kind: input, shape index: {}]
  %s3 = inlined_call_operand.hbm [shape: bf16[8,1024], index: 3, kind: input, shape index: {}]
  %s4 = inlined_call_operand.hbm [shape: bf16[1024,128], index: 4, kind: input, shape index: {}]
  %s5 = inlined_call_operand.vmem [shape: f32[1,128], index: 5, kind: input, shape index: {}]
  %s6 = inlined_call_operand.hbm [shape: f32[8,128], index: 6, kind: output, shape index: {0}]
  %s7 = inlined_call_operand.hbm [shape: f32[8,128], index: 7, kind: output, shape index: {1}]
  %s8 = inlined_call_operand.hbm [shape: f32[8,128], index: 8, kind: output, shape index: {2}]
  %9 = xla_tuple %s6, %s7, %s8
  %s10 = sld [smem:[#allocation0]]
  $region66: #{tpu_custom_call.1} parent=0
    _
  %s12 = ssub.s32 1, %s10
  %s13 = scalar_select 0, %s12, %s10
  $region1: #{tpu_custom_call.1} parent=0
    #allocation2 [shape = 'u8[2048]{0}', space=vmem, size = 0x800, scoped, tag = 'input window, operand 0, single buffered']
    #allocation3 [shape = 's32[1]{0}', space=sflag, size = 0x4, scoped, tag = 'scoped memory for tpu_custom_call.1']
    #allocation4 [shape = 's32[1]{0}', space=sflag, size = 0x4, scoped, tag = 'scoped memory for tpu_custom_call.1']
    #allocation5 [shape = 'u8[8192]{0}', space=vmem, size = 0x2000, scoped, tag = 'input window, operand 1, single buffered']
    #allocation6 [shape = 's32[1]{0}', space=sflag, size = 0x4, scoped, tag = 'scoped memory for tpu_custom_call.1']
    #allocation7 [shape = 'u8[16384]{0}', space=vmem, size = 0x4000, scoped, tag = 'input window, operand 3, single buffered']
    #allocation8 [shape = 'u8[262144]{0}', space=vmem, size = 0x40000, scoped, tag = 'input window, operand 4, single buffered']
    #allocation9 [shape = 's32[1]{0}', space=sflag, size = 0x4, scoped, tag = 'scoped memory for tpu_custom_call.1']
    #allocation10 [shape = 'u8[4096]{0}', space=vmem, size = 0x1000, scoped, tag = 'output window, operand 0, single buffered']
    #allocation11 [shape = 'u8[4096]{0}', space=vmem, size = 0x1000, scoped, tag = 'output window, operand 1, single buffered']
    #allocation12 [shape = 's32[1]{0}', space=sflag, size = 0x4, scoped, tag = 'scoped memory for tpu_custom_call.1']
    #allocation13 [shape = 'u8[4096]{0}', space=vmem, size = 0x1000, scoped, tag = 'output window, operand 2, single buffered']
    %14 = vsyncpa [#allocation3], 0
    %15 = vsyncpa [#allocation6], 0
    %16 = vsyncpa [#allocation9], 0
    %17 = vsyncpa [#allocation4], 0
    %18 = vsyncpa [#allocation12], 0
    // Predicated region
    $region2: #{tpu_custom_call.1} parent=1 // pred_check
      _
    $region3: #{tpu_custom_call.1} parent=1 // pred_check_branch
      %20 = sbr.rel (0) target = $region5
    $region4: #{tpu_custom_call.1} parent=1 // pred_region
      %s22 = ssub.s32 64, 64
      %23 = vsyncadd [#allocation3], %s22
      %s25 = sshll.u32 [#allocation2], 4
      %s26 = int_to_ptr.vmem [resolvable:$true] %s25
      %28 = dma.hbm_to_vmem [thread:$0]  %s0, 64, %s26, [#allocation3]
    $region5: #{tpu_custom_call.1} parent=1 // pred_fallthru
      _
    // Predicated region
    $region6: #{tpu_custom_call.1} parent=1 // pred_check
      _
    $region7: #{tpu_custom_call.1} parent=1 // pred_check_branch
      %30 = sbr.rel (0) target = $region9
    $region8: #{tpu_custom_call.1} parent=1 // pred_region
      %s32 = ssub.s32 256, 256
      %33 = vsyncadd [#allocation6], %s32
      %s34 = sshll.u32 [#allocation5], 4
      %s35 = int_to_ptr.vmem [resolvable:$true] %s34
      %40 = dma.hbm_to_vmem [thread:$0]  %s1, 256, %s35, [#allocation6], 64, 64, 4
    $region9: #{tpu_custom_call.1} parent=1 // pred_fallthru
      _
    // Predicated region
    $region10: #{tpu_custom_call.1} parent=1 // pred_check
      _
    $region11: #{tpu_custom_call.1} parent=1 // pred_check_branch
      %42 = sbr.rel (0) target = $region13
    $region12: #{tpu_custom_call.1} parent=1 // pred_region
      _
    $region13: #{tpu_custom_call.1} parent=1 // pred_fallthru
      _
    // Predicated region
    $region14: #{tpu_custom_call.1} parent=1 // pred_check
      _
    $region15: #{tpu_custom_call.1} parent=1 // pred_check_branch
      %44 = sbr.rel (0) target = $region17
    $region16: #{tpu_custom_call.1} parent=1 // pred_region
      %s46 = ssub.s32 512, 512
      %47 = vsyncadd [#allocation6], %s46
      %s49 = sshll.u32 [#allocation7], 4
      %s50 = int_to_ptr.vmem [resolvable:$true] %s49
      %52 = dma.hbm_to_vmem [thread:$0]  %s3, 512, %s50, [#allocation6]
    $region17: #{tpu_custom_call.1} parent=1 // pred_fallthru
      _
    // Predicated region
    $region18: #{tpu_custom_call.1} parent=1 // pred_check
      _
    $region19: #{tpu_custom_call.1} parent=1 // pred_check_branch
      %54 = sbr.rel (0) target = $region21
    $region20: #{tpu_custom_call.1} parent=1 // pred_region
      %s56 = ssub.s32 8192, 8192
      %57 = vsyncadd [#allocation9], %s56
      %s58 = sshll.u32 [#allocation8], 4
      %s59 = int_to_ptr.vmem [resolvable:$true] %s58
      %64 = dma.hbm_to_vmem [thread:$0]  %s4, 8192, %s59, [#allocation9], 64, 64, 4
    $region21: #{tpu_custom_call.1} parent=1 // pred_fallthru
      _
    // Predicated region
    $region22: #{tpu_custom_call.1} parent=1 // pred_check
      _
    $region23: #{tpu_custom_call.1} parent=1 // pred_check_branch
      %66 = sbr.rel (0) target = $region25
    $region24: #{tpu_custom_call.1} parent=1 // pred_region
      _
    $region25: #{tpu_custom_call.1} parent=1 // pred_fallthru
      _
    // Predicated region
    $region26: #{tpu_custom_call.1} parent=1 // pred_check
      _
    $region27: #{tpu_custom_call.1} parent=1 // pred_check_branch
      %68 = sbr.rel (0) target = $region29
    $region28: #{tpu_custom_call.1} parent=1 // pred_region
      %69 = dma.done [#allocation3], 64
    $region29: #{tpu_custom_call.1} parent=1 // pred_fallthru
      _
    // Predicated region
    $region30: #{tpu_custom_call.1} parent=1 // pred_check
      _
    $region31: #{tpu_custom_call.1} parent=1 // pred_check_branch
      %71 = sbr.rel (0) target = $region33
    $region32: #{tpu_custom_call.1} parent=1 // pred_region
      %72 = dma.done [#allocation6], 256
    $region33: #{tpu_custom_call.1} parent=1 // pred_fallthru
      _
    // Predicated region
    $region34: #{tpu_custom_call.1} parent=1 // pred_check
      _
    $region35: #{tpu_custom_call.1} parent=1 // pred_check_branch
      %74 = sbr.rel (0) target = $region37
    $region36: #{tpu_custom_call.1} parent=1 // pred_region
      %75 = dma.done [#allocation6], 512
    $region37: #{tpu_custom_call.1} parent=1 // pred_fallthru
      _
    // Predicated region
    $region38: #{tpu_custom_call.1} parent=1 // pred_check
      _
    $region39: #{tpu_custom_call.1} parent=1 // pred_check_branch
      %77 = sbr.rel (0) target = $region41
    $region40: #{tpu_custom_call.1} parent=1 // pred_region
      %78 = dma.done [#allocation9], 8192
    $region41: #{tpu_custom_call.1} parent=1 // pred_fallthru
      _
    %v80 = vld [vmem:[#allocation2] sm:$0xf]
    %v81 = vld [vmem:[#allocation5] sm:$0xf]
    %v82 = vld [vmem:[#allocation5 + $0x4] sm:$0xf]
    %v83 = vld [vmem:[#allocation5 + $0x8] sm:$0xf]
    %v84 = vld [vmem:[#allocation5 + $0xc] sm:$0xf]
    %v85 = vld [vmem:[%s2] sm:$0x1]
    %v87 = vlaneseq
    %v88 = vshrl.u32 %v87, 7
    %v89 = vsub.s32 0, %v88
    %v90 = vrot.slane %v85, %v89
    %v96 = vunpack.c.l.b16 %v81
    %v97 = vunpack.c.l.b16 %v82
    %v98 = vunpack.c.l.b16 %v83
    %v99 = vunpack.c.l.b16 %v84
    %v100 = vpack.c.b16 %v97, %v96
    %v101 = vpack.c.b16 %v99, %v98
    %vm104 = vcmask 261120
    %v106 = vsel %vm104, %v80, 0
    %108 = vmatprep.subr.bf16.mxu0 0
    %109 = vmatpush1.bf16.msra.mxu0 %v100
    %110 = vmatprep.subr.bf16.mxu0 0
    %111 = vmatpush1.bf16.msra.mxu0 %v101
    %112 = vmatprep.subr.bf16.mxu0 0
    %113 = vmatpush1.bf16.msra.mxu0 0
    %114 = vmatprep.subr.bf16.mxu0 0
    %115 = vmatpush1.bf16.msra.mxu0 0
    %116 = vmatprep.subr.bf16.mxu0 0
    %117 = vmatpush1.bf16.msra.mxu0 0
    %118 = vmatprep.subr.bf16.mxu0 0
    %119 = vmatpush1.bf16.msra.mxu0 0
    %120 = vmatprep.subr.bf16.mxu0 0
    %121 = vmatpush1.bf16.msra.mxu0 0
    %122 = vmatprep.subr.bf16.mxu0 0
    %123 = vmatpush1.bf16.msra.mxu0 0
    %124 = vmatprep.subr.bf16.mxu0 0
    %125 = vmatpush1.bf16.msra.mxu0 0
    %126 = vmatprep.subr.bf16.mxu0 0
    %127 = vmatpush1.bf16.msra.mxu0 0
    %128 = vmatprep.subr.bf16.mxu0 0
    %129 = vmatpush1.bf16.msra.mxu0 0
    %130 = vmatprep.subr.bf16.mxu0 0
    %131 = vmatpush1.bf16.msra.mxu0 0
    %132 = vmatprep.subr.bf16.mxu0 0
    %133 = vmatpush1.bf16.msra.mxu0 0
    %134 = vmatprep.subr.bf16.mxu0 0
    %135 = vmatpush1.bf16.msra.mxu0 0
    %136 = vmatprep.subr.bf16.mxu0 0
    %137 = vmatpush1.bf16.msra.mxu0 0
    %138 = vmatprep.subr.bf16.mxu0 0
    %139 = vmatpush1.bf16.msra.mxu0 0
    %140 = vmatprep.mubr.bf16.mxu0 0
    %141 = vmatmul.mubr.bf16.gmra.mrb[0].mxu0 %v106
    %v142 = vpop.f32.mrb[0].mxu0
    %v143 = vadd.f32 %v90, %v142
    %v144 = vpop.f32.mrb[0].mxu0
    %v145 = vpop.f32.mrb[0].mxu0
    %v146 = vpop.f32.mrb[0].mxu0
    %147 = vdwg.mxu0
    %v148 = vld [vmem:[#allocation7] sm:$0xff]
    %v149 = vld [vmem:[#allocation7 + $0x8] sm:$0xff]
    %v150 = vld [vmem:[#allocation7 + $0x10] sm:$0xff]
    %v151 = vld [vmem:[#allocation7 + $0x18] sm:$0xff]
    %v152 = vld [vmem:[#allocation8] sm:$0xf]
    %v153 = vld [vmem:[#allocation8 + $0x4] sm:$0xf]
    %v154 = vld [vmem:[#allocation8 + $0x8] sm:$0xf]
    %v155 = vld [vmem:[#allocation8 + $0xc] sm:$0xf]
    %v156 = vld [vmem:[#allocation8 + $0x10] sm:$0xf]
    %v157 = vld [vmem:[#allocation8 + $0x14] sm:$0xf]
    %v158 = vld [vmem:[#allocation8 + $0x18] sm:$0xf]
    %v159 = vld [vmem:[#allocation8 + $0x1c] sm:$0xf]
    %v160 = vld [vmem:[#allocation8 + $0x20] sm:$0xf]
    %v161 = vld [vmem:[#allocation8 + $0x24] sm:$0xf]
    %v162 = vld [vmem:[#allocation8 + $0x28] sm:$0xf]
    %v163 = vld [vmem:[#allocation8 + $0x2c] sm:$0xf]
    %v164 = vld [vmem:[#allocation8 + $0x30] sm:$0xf]
    %v165 = vld [vmem:[#allocation8 + $0x34] sm:$0xf]
    %v166 = vld [vmem:[#allocation8 + $0x38] sm:$0xf]
    %v167 = vld [vmem:[#allocation8 + $0x3c] sm:$0xf]
    %v168 = vld [vmem:[#allocation8 + $0x40] sm:$0xf]
    %v169 = vld [vmem:[#allocation8 + $0x44] sm:$0xf]
    %v170 = vld [vmem:[#allocation8 + $0x48] sm:$0xf]
    %v171 = vld [vmem:[#allocation8 + $0x4c] sm:$0xf]
    %v172 = vld [vmem:[#allocation8 + $0x50] sm:$0xf]
    %v173 = vld [vmem:[#allocation8 + $0x54] sm:$0xf]
    %v174 = vld [vmem:[#allocation8 + $0x58] sm:$0xf]
    %v175 = vld [vmem:[#allocation8 + $0x5c] sm:$0xf]
    %v176 = vld [vmem:[#allocation8 + $0x60] sm:$0xf]
    %v177 = vld [vmem:[#allocation8 + $0x64] sm:$0xf]
    %v178 = vld [vmem:[#allocation8 + $0x68] sm:$0xf]
    %v179 = vld [vmem:[#allocation8 + $0x6c] sm:$0xf]
    %v180 = vld [vmem:[#allocation8 + $0x70] sm:$0xf]
    %v181 = vld [vmem:[#allocation8 + $0x74] sm:$0xf]
    %v182 = vld [vmem:[#allocation8 + $0x78] sm:$0xf]
    %v183 = vld [vmem:[#allocation8 + $0x7c] sm:$0xf]
    %v184 = vld [vmem:[#allocation8 + $0x80] sm:$0xf]
    %v185 = vld [vmem:[#allocation8 + $0x84] sm:$0xf]
    %v186 = vld [vmem:[#allocation8 + $0x88] sm:$0xf]
    %v187 = vld [vmem:[#allocation8 + $0x8c] sm:$0xf]
    %v188 = vld [vmem:[#allocation8 + $0x90] sm:$0xf]
    %v189 = vld [vmem:[#allocation8 + $0x94] sm:$0xf]
    %v190 = vld [vmem:[#allocation8 + $0x98] sm:$0xf]
    %v191 = vld [vmem:[#allocation8 + $0x9c] sm:$0xf]
    %v192 = vld [vmem:[#allocation8 + $0xa0] sm:$0xf]
    %v193 = vld [vmem:[#allocation8 + $0xa4] sm:$0xf]
    %v194 = vld [vmem:[#allocation8 + $0xa8] sm:$0xf]
    %v195 = vld [vmem:[#allocation8 + $0xac] sm:$0xf]
    %v196 = vld [vmem:[#allocation8 + $0xb0] sm:$0xf]
    %v197 = vld [vmem:[#allocation8 + $0xb4] sm:$0xf]
    %v198 = vld [vmem:[#allocation8 + $0xb8] sm:$0xf]
    %v199 = vld [vmem:[#allocation8 + $0xbc] sm:$0xf]
    %v200 = vld [vmem:[#allocation8 + $0xc0] sm:$0xf]
    %v201 = vld [vmem:[#allocation8 + $0xc4] sm:$0xf]
    %v202 = vld [vmem:[#allocation8 + $0xc8] sm:$0xf]
    %v203 = vld [vmem:[#allocation8 + $0xcc] sm:$0xf]
    %v204 = vld [vmem:[#allocation8 + $0xd0] sm:$0xf]
    %v205 = vld [vmem:[#allocation8 + $0xd4] sm:$0xf]
    %v206 = vld [vmem:[#allocation8 + $0xd8] sm:$0xf]
    %v207 = vld [vmem:[#allocation8 + $0xdc] sm:$0xf]
    %v208 = vld [vmem:[#allocation8 + $0xe0] sm:$0xf]
    %v209 = vld [vmem:[#allocation8 + $0xe4] sm:$0xf]
    %v210 = vld [vmem:[#allocation8 + $0xe8] sm:$0xf]
    %v211 = vld [vmem:[#allocation8 + $0xec] sm:$0xf]
    %v212 = vld [vmem:[#allocation8 + $0xf0] sm:$0xf]
    %v213 = vld [vmem:[#allocation8 + $0xf4] sm:$0xf]
    %v214 = vld [vmem:[#allocation8 + $0xf8] sm:$0xf]
    %v215 = vld [vmem:[#allocation8 + $0xfc] sm:$0xf]
    %v216 = vld [vmem:[#allocation8 + $0x100] sm:$0xf]
    %v217 = vld [vmem:[#allocation8 + $0x104] sm:$0xf]
    %v218 = vld [vmem:[#allocation8 + $0x108] sm:$0xf]
    %v219 = vld [vmem:[#allocation8 + $0x10c] sm:$0xf]
    %v220 = vld [vmem:[#allocation8 + $0x110] sm:$0xf]
    %v221 = vld [vmem:[#allocation8 + $0x114] sm:$0xf]
    %v222 = vld [vmem:[#allocation8 + $0x118] sm:$0xf]
    %v223 = vld [vmem:[#allocation8 + $0x11c] sm:$0xf]
    %v224 = vld [vmem:[#allocation8 + $0x120] sm:$0xf]
    %v225 = vld [vmem:[#allocation8 + $0x124] sm:$0xf]
    %v226 = vld [vmem:[#allocation8 + $0x128] sm:$0xf]
    %v227 = vld [vmem:[#allocation8 + $0x12c] sm:$0xf]
    %v228 = vld [vmem:[#allocation8 + $0x130] sm:$0xf]
    %v229 = vld [vmem:[#allocation8 + $0x134] sm:$0xf]
    %v230 = vld [vmem:[#allocation8 + $0x138] sm:$0xf]
    %v231 = vld [vmem:[#allocation8 + $0x13c] sm:$0xf]
    %v232 = vld [vmem:[#allocation8 + $0x140] sm:$0xf]
    %v233 = vld [vmem:[#allocation8 + $0x144] sm:$0xf]
    %v234 = vld [vmem:[#allocation8 + $0x148] sm:$0xf]
    %v235 = vld [vmem:[#allocation8 + $0x14c] sm:$0xf]
    %v236 = vld [vmem:[#allocation8 + $0x150] sm:$0xf]
    %v237 = vld [vmem:[#allocation8 + $0x154] sm:$0xf]
    %v238 = vld [vmem:[#allocation8 + $0x158] sm:$0xf]
    %v239 = vld [vmem:[#allocation8 + $0x15c] sm:$0xf]
    %v240 = vld [vmem:[#allocation8 + $0x160] sm:$0xf]
    %v241 = vld [vmem:[#allocation8 + $0x164] sm:$0xf]
    %v242 = vld [vmem:[#allocation8 + $0x168] sm:$0xf]
    %v243 = vld [vmem:[#allocation8 + $0x16c] sm:$0xf]
    %v244 = vld [vmem:[#allocation8 + $0x170] sm:$0xf]
    %v245 = vld [vmem:[#allocation8 + $0x174] sm:$0xf]
    %v246 = vld [vmem:[#allocation8 + $0x178] sm:$0xf]
    %v247 = vld [vmem:[#allocation8 + $0x17c] sm:$0xf]
    %v248 = vld [vmem:[#allocation8 + $0x180] sm:$0xf]
    %v249 = vld [vmem:[#allocation8 + $0x184] sm:$0xf]
    %v250 = vld [vmem:[#allocation8 + $0x188] sm:$0xf]
    %v251 = vld [vmem:[#allocation8 + $0x18c] sm:$0xf]
    %v252 = vld [vmem:[#allocation8 + $0x190] sm:$0xf]
    %v253 = vld [vmem:[#allocation8 + $0x194] sm:$0xf]
    %v254 = vld [vmem:[#allocation8 + $0x198] sm:$0xf]
    %v255 = vld [vmem:[#allocation8 + $0x19c] sm:$0xf]
    %v256 = vld [vmem:[#allocation8 + $0x1a0] sm:$0xf]
    %v257 = vld [vmem:[#allocation8 + $0x1a4] sm:$0xf]
    %v258 = vld [vmem:[#allocation8 + $0x1a8] sm:$0xf]
    %v259 = vld [vmem:[#allocation8 + $0x1ac] sm:$0xf]
    %v260 = vld [vmem:[#allocation8 + $0x1b0] sm:$0xf]
    %v261 = vld [vmem:[#allocation8 + $0x1b4] sm:$0xf]
    %v262 = vld [vmem:[#allocation8 + $0x1b8] sm:$0xf]
    %v263 = vld [vmem:[#allocation8 + $0x1bc] sm:$0xf]
    %v264 = vld [vmem:[#allocation8 + $0x1c0] sm:$0xf]
    %v265 = vld [vmem:[#allocation8 + $0x1c4] sm:$0xf]
    %v266 = vld [vmem:[#allocation8 + $0x1c8] sm:$0xf]
    %v267 = vld [vmem:[#allocation8 + $0x1cc] sm:$0xf]
    %v268 = vld [vmem:[#allocation8 + $0x1d0] sm:$0xf]
    %v269 = vld [vmem:[#allocation8 + $0x1d4] sm:$0xf]
    %v270 = vld [vmem:[#allocation8 + $0x1d8] sm:$0xf]
    %v271 = vld [vmem:[#allocation8 + $0x1dc] sm:$0xf]
    %v272 = vld [vmem:[#allocation8 + $0x1e0] sm:$0xf]
    %v273 = vld [vmem:[#allocation8 + $0x1e4] sm:$0xf]
    %v274 = vld [vmem:[#allocation8 + $0x1e8] sm:$0xf]
    %v275 = vld [vmem:[#allocation8 + $0x1ec] sm:$0xf]
    %v276 = vld [vmem:[#allocation8 + $0x1f0] sm:$0xf]
    %v277 = vld [vmem:[#allocation8 + $0x1f4] sm:$0xf]
    %v278 = vld [vmem:[#allocation8 + $0x1f8] sm:$0xf]
    %v279 = vld [vmem:[#allocation8 + $0x1fc] sm:$0xf]
    %v280 = vld [vmem:[%s5] sm:$0x1]
    %v282 = vlaneseq
    %v283 = vshrl.u32 %v282, 7
    %v284 = vsub.s32 0, %v283
    %v285 = vrot.slane %v280, %v284
    %v291 = vunpack.c.l.b16 %v148
    %v292 = vunpack.c.h.b16 %v148
    %v293 = vunpack.c.l.b16 %v149
    %v294 = vunpack.c.h.b16 %v149
    %v295 = vunpack.c.l.b16 %v150
    %v296 = vunpack.c.h.b16 %v150
    %v297 = vunpack.c.l.b16 %v151
    %v298 = vunpack.c.h.b16 %v151
    %v299 = vpack.c.b16 %v291, %v291
    %v300 = vpack.c.b16 %v292, %v292
    %v301 = vpack.c.b16 %v293, %v293
    %v302 = vpack.c.b16 %v294, %v294
    %v303 = vpack.c.b16 %v295, %v295
    %v304 = vpack.c.b16 %v296, %v296
    %v305 = vpack.c.b16 %v297, %v297
    %v306 = vpack.c.b16 %v298, %v298
    %v443 = vunpack.c.l.b16 %v152
    %v444 = vunpack.c.l.b16 %v153
    %v445 = vunpack.c.l.b16 %v154
    %v446 = vunpack.c.l.b16 %v155
    %v447 = vunpack.c.l.b16 %v156
    %v448 = vunpack.c.l.b16 %v157
    %v449 = vunpack.c.l.b16 %v158
    %v450 = vunpack.c.l.b16 %v159
    %v451 = vunpack.c.l.b16 %v160
    %v452 = vunpack.c.l.b16 %v161
    %v453 = vunpack.c.l.b16 %v162
    %v454 = vunpack.c.l.b16 %v163
    %v455 = vunpack.c.l.b16 %v164
    %v456 = vunpack.c.l.b16 %v165
    %v457 = vunpack.c.l.b16 %v166
    %v458 = vunpack.c.l.b16 %v167
    %v459 = vunpack.c.l.b16 %v168
    %v460 = vunpack.c.l.b16 %v169
    %v461 = vunpack.c.l.b16 %v170
    %v462 = vunpack.c.l.b16 %v171
    %v463 = vunpack.c.l.b16 %v172
    %v464 = vunpack.c.l.b16 %v173
    %v465 = vunpack.c.l.b16 %v174
    %v466 = vunpack.c.l.b16 %v175
    %v467 = vunpack.c.l.b16 %v176
    %v468 = vunpack.c.l.b16 %v177
    %v469 = vunpack.c.l.b16 %v178
    %v470 = vunpack.c.l.b16 %v179
    %v471 = vunpack.c.l.b16 %v180
    %v472 = vunpack.c.l.b16 %v181
    %v473 = vunpack.c.l.b16 %v182
    %v474 = vunpack.c.l.b16 %v183
    %v475 = vunpack.c.l.b16 %v184
    %v476 = vunpack.c.l.b16 %v185
    %v477 = vunpack.c.l.b16 %v186
    %v478 = vunpack.c.l.b16 %v187
    %v479 = vunpack.c.l.b16 %v188
    %v480 = vunpack.c.l.b16 %v189
    %v481 = vunpack.c.l.b16 %v190
    %v482 = vunpack.c.l.b16 %v191
    %v483 = vunpack.c.l.b16 %v192
    %v484 = vunpack.c.l.b16 %v193
    %v485 = vunpack.c.l.b16 %v194
    %v486 = vunpack.c.l.b16 %v195
    %v487 = vunpack.c.l.b16 %v196
    %v488 = vunpack.c.l.b16 %v197
    %v489 = vunpack.c.l.b16 %v198
    %v490 = vunpack.c.l.b16 %v199
    %v491 = vunpack.c.l.b16 %v200
    %v492 = vunpack.c.l.b16 %v201
    %v493 = vunpack.c.l.b16 %v202
    %v494 = vunpack.c.l.b16 %v203
    %v495 = vunpack.c.l.b16 %v204
    %v496 = vunpack.c.l.b16 %v205
    %v497 = vunpack.c.l.b16 %v206
    %v498 = vunpack.c.l.b16 %v207
    %v499 = vunpack.c.l.b16 %v208
    %v500 = vunpack.c.l.b16 %v209
    %v501 = vunpack.c.l.b16 %v210
    %v502 = vunpack.c.l.b16 %v211
    %v503 = vunpack.c.l.b16 %v212
    %v504 = vunpack.c.l.b16 %v213
    %v505 = vunpack.c.l.b16 %v214
    %v506 = vunpack.c.l.b16 %v215
    %v507 = vunpack.c.l.b16 %v216
    %v508 = vunpack.c.l.b16 %v217
    %v509 = vunpack.c.l.b16 %v218
    %v510 = vunpack.c.l.b16 %v219
    %v511 = vunpack.c.l.b16 %v220
    %v512 = vunpack.c.l.b16 %v221
    %v513 = vunpack.c.l.b16 %v222
    %v514 = vunpack.c.l.b16 %v223
    %v515 = vunpack.c.l.b16 %v224
    %v516 = vunpack.c.l.b16 %v225
    %v517 = vunpack.c.l.b16 %v226
    %v518 = vunpack.c.l.b16 %v227
    %v519 = vunpack.c.l.b16 %v228
    %v520 = vunpack.c.l.b16 %v229
    %v521 = vunpack.c.l.b16 %v230
    %v522 = vunpack.c.l.b16 %v231
    %v523 = vunpack.c.l.b16 %v232
    %v524 = vunpack.c.l.b16 %v233
    %v525 = vunpack.c.l.b16 %v234
    %v526 = vunpack.c.l.b16 %v235
    %v527 = vunpack.c.l.b16 %v236
    %v528 = vunpack.c.l.b16 %v237
    %v529 = vunpack.c.l.b16 %v238
    %v530 = vunpack.c.l.b16 %v239
    %v531 = vunpack.c.l.b16 %v240
    %v532 = vunpack.c.l.b16 %v241
    %v533 = vunpack.c.l.b16 %v242
    %v534 = vunpack.c.l.b16 %v243
    %v535 = vunpack.c.l.b16 %v244
    %v536 = vunpack.c.l.b16 %v245
    %v537 = vunpack.c.l.b16 %v246
    %v538 = vunpack.c.l.b16 %v247
    %v539 = vunpack.c.l.b16 %v248
    %v540 = vunpack.c.l.b16 %v249
    %v541 = vunpack.c.l.b16 %v250
    %v542 = vunpack.c.l.b16 %v251
    %v543 = vunpack.c.l.b16 %v252
    %v544 = vunpack.c.l.b16 %v253
    %v545 = vunpack.c.l.b16 %v254
    %v546 = vunpack.c.l.b16 %v255
    %v547 = vunpack.c.l.b16 %v256
    %v548 = vunpack.c.l.b16 %v257
    %v549 = vunpack.c.l.b16 %v258
    %v550 = vunpack.c.l.b16 %v259
    %v551 = vunpack.c.l.b16 %v260
    %v552 = vunpack.c.l.b16 %v261
    %v553 = vunpack.c.l.b16 %v262
    %v554 = vunpack.c.l.b16 %v263
    %v555 = vunpack.c.l.b16 %v264
    %v556 = vunpack.c.l.b16 %v265
    %v557 = vunpack.c.l.b16 %v266
    %v558 = vunpack.c.l.b16 %v267
    %v559 = vunpack.c.l.b16 %v268
    %v560 = vunpack.c.l.b16 %v269
    %v561 = vunpack.c.l.b16 %v270
    %v562 = vunpack.c.l.b16 %v271
    %v563 = vunpack.c.l.b16 %v272
    %v564 = vunpack.c.l.b16 %v273
    %v565 = vunpack.c.l.b16 %v274
    %v566 = vunpack.c.l.b16 %v275
    %v567 = vunpack.c.l.b16 %v276
    %v568 = vunpack.c.l.b16 %v277
    %v569 = vunpack.c.l.b16 %v278
    %v570 = vunpack.c.l.b16 %v279
    %v571 = vpack.c.b16 %v444, %v443
    %v572 = vpack.c.b16 %v446, %v445
    %v573 = vpack.c.b16 %v448, %v447
    %v574 = vpack.c.b16 %v450, %v449
    %v575 = vpack.c.b16 %v452, %v451
    %v576 = vpack.c.b16 %v454, %v453
    %v577 = vpack.c.b16 %v456, %v455
    %v578 = vpack.c.b16 %v458, %v457
    %v579 = vpack.c.b16 %v460, %v459
    %v580 = vpack.c.b16 %v462, %v461
    %v581 = vpack.c.b16 %v464, %v463
    %v582 = vpack.c.b16 %v466, %v465
    %v583 = vpack.c.b16 %v468, %v467
    %v584 = vpack.c.b16 %v470, %v469
    %v585 = vpack.c.b16 %v472, %v471
    %v586 = vpack.c.b16 %v474, %v473
    %v587 = vpack.c.b16 %v476, %v475
    %v588 = vpack.c.b16 %v478, %v477
    %v589 = vpack.c.b16 %v480, %v479
    %v590 = vpack.c.b16 %v482, %v481
    %v591 = vpack.c.b16 %v484, %v483
    %v592 = vpack.c.b16 %v486, %v485
    %v593 = vpack.c.b16 %v488, %v487
    %v594 = vpack.c.b16 %v490, %v489
    %v595 = vpack.c.b16 %v492, %v491
    %v596 = vpack.c.b16 %v494, %v493
    %v597 = vpack.c.b16 %v496, %v495
    %v598 = vpack.c.b16 %v498, %v497
    %v599 = vpack.c.b16 %v500, %v499
    %v600 = vpack.c.b16 %v502, %v501
    %v601 = vpack.c.b16 %v504, %v503
    %v602 = vpack.c.b16 %v506, %v505
    %v603 = vpack.c.b16 %v508, %v507
    %v604 = vpack.c.b16 %v510, %v509
    %v605 = vpack.c.b16 %v512, %v511
    %v606 = vpack.c.b16 %v514, %v513
    %v607 = vpack.c.b16 %v516, %v515
    %v608 = vpack.c.b16 %v518, %v517
    %v609 = vpack.c.b16 %v520, %v519
    %v610 = vpack.c.b16 %v522, %v521
    %v611 = vpack.c.b16 %v524, %v523
    %v612 = vpack.c.b16 %v526, %v525
    %v613 = vpack.c.b16 %v528, %v527
    %v614 = vpack.c.b16 %v530, %v529
    %v615 = vpack.c.b16 %v532, %v531
    %v616 = vpack.c.b16 %v534, %v533
    %v617 = vpack.c.b16 %v536, %v535
    %v618 = vpack.c.b16 %v538, %v537
    %v619 = vpack.c.b16 %v540, %v539
    %v620 = vpack.c.b16 %v542, %v541
    %v621 = vpack.c.b16 %v544, %v543
    %v622 = vpack.c.b16 %v546, %v545
    %v623 = vpack.c.b16 %v548, %v547
    %v624 = vpack.c.b16 %v550, %v549
    %v625 = vpack.c.b16 %v552, %v551
    %v626 = vpack.c.b16 %v554, %v553
    %v627 = vpack.c.b16 %v556, %v555
    %v628 = vpack.c.b16 %v558, %v557
    %v629 = vpack.c.b16 %v560, %v559
    %v630 = vpack.c.b16 %v562, %v561
    %v631 = vpack.c.b16 %v564, %v563
    %v632 = vpack.c.b16 %v566, %v565
    %v633 = vpack.c.b16 %v568, %v567
    %v634 = vpack.c.b16 %v570, %v569
    %699 = vmatprep.subr.bf16.mxu0 0
    %700 = vmatpush1.bf16.msra.mxu0 %v571
    %701 = vmatprep.subr.bf16.mxu0 0
    %702 = vmatpush1.bf16.msra.mxu0 %v572
    %703 = vmatprep.subr.bf16.mxu0 0
    %704 = vmatpush1.bf16.msra.mxu0 %v573
    %705 = vmatprep.subr.bf16.mxu0 0
    %706 = vmatpush1.bf16.msra.mxu0 %v574
    %707 = vmatprep.subr.bf16.mxu0 0
    %708 = vmatpush1.bf16.msra.mxu0 %v575
    %709 = vmatprep.subr.bf16.mxu0 0
    %710 = vmatpush1.bf16.msra.mxu0 %v576
    %711 = vmatprep.subr.bf16.mxu0 0
    %712 = vmatpush1.bf16.msra.mxu0 %v577
    %713 = vmatprep.subr.bf16.mxu0 0
    %714 = vmatpush1.bf16.msra.mxu0 %v578
    %715 = vmatprep.subr.bf16.mxu0 0
    %716 = vmatpush1.bf16.msra.mxu0 %v579
    %717 = vmatprep.subr.bf16.mxu0 0
    %718 = vmatpush1.bf16.msra.mxu0 %v580
    %719 = vmatprep.subr.bf16.mxu0 0
    %720 = vmatpush1.bf16.msra.mxu0 %v581
    %721 = vmatprep.subr.bf16.mxu0 0
    %722 = vmatpush1.bf16.msra.mxu0 %v582
    %723 = vmatprep.subr.bf16.mxu0 0
    %724 = vmatpush1.bf16.msra.mxu0 %v583
    %725 = vmatprep.subr.bf16.mxu0 0
    %726 = vmatpush1.bf16.msra.mxu0 %v584
    %727 = vmatprep.subr.bf16.mxu0 0
    %728 = vmatpush1.bf16.msra.mxu0 %v585
    %729 = vmatprep.subr.bf16.mxu0 0
    %730 = vmatpush1.bf16.msra.mxu0 %v586
    %731 = vmatprep.mubr.bf16.mxu0 %v300
    %732 = vmatmul.mubr.bf16.gmra.mrb[0].mxu0 %v299
    %v733 = vpop.f32.mrb[0].mxu0
    %v734 = vadd.f32 %v285, %v733
    %v735 = vpop.f32.mrb[0].mxu0
    %v736 = vpop.f32.mrb[0].mxu0
    %v737 = vpop.f32.mrb[0].mxu0
    %738 = vdwg.mxu0
    %739 = vmatprep.subr.bf16.mxu0 0
    %740 = vmatpush1.bf16.msra.mxu0 %v587
    %741 = vmatprep.subr.bf16.mxu0 0
    %742 = vmatpush1.bf16.msra.mxu0 %v588
    %743 = vmatprep.subr.bf16.mxu0 0
    %744 = vmatpush1.bf16.msra.mxu0 %v589
    %745 = vmatprep.subr.bf16.mxu0 0
    %746 = vmatpush1.bf16.msra.mxu0 %v590
    %747 = vmatprep.subr.bf16.mxu0 0
    %748 = vmatpush1.bf16.msra.mxu0 %v591
    %749 = vmatprep.subr.bf16.mxu0 0
    %750 = vmatpush1.bf16.msra.mxu0 %v592
    %751 = vmatprep.subr.bf16.mxu0 0
    %752 = vmatpush1.bf16.msra.mxu0 %v593
    %753 = vmatprep.subr.bf16.mxu0 0
    %754 = vmatpush1.bf16.msra.mxu0 %v594
    %755 = vmatprep.subr.bf16.mxu0 0
    %756 = vmatpush1.bf16.msra.mxu0 %v595
    %757 = vmatprep.subr.bf16.mxu0 0
    %758 = vmatpush1.bf16.msra.mxu0 %v596
    %759 = vmatprep.subr.bf16.mxu0 0
    %760 = vmatpush1.bf16.msra.mxu0 %v597
    %761 = vmatprep.subr.bf16.mxu0 0
    %762 = vmatpush1.bf16.msra.mxu0 %v598
    %763 = vmatprep.subr.bf16.mxu0 0
    %764 = vmatpush1.bf16.msra.mxu0 %v599
    %765 = vmatprep.subr.bf16.mxu0 0
    %766 = vmatpush1.bf16.msra.mxu0 %v600
    %767 = vmatprep.subr.bf16.mxu0 0
    %768 = vmatpush1.bf16.msra.mxu0 %v601
    %769 = vmatprep.subr.bf16.mxu0 0
    %770 = vmatpush1.bf16.msra.mxu0 %v602
    %771 = vmatprep.mubr.bf16.mxu0 %v302
    %772 = vmatmul.mubr.bf16.gmra.mrb[0].mxu0 %v301
    %v773 = vpop.f32.mrb[0].mxu0
    %v774 = vadd.f32 %v734, %v773
    %v775 = vpop.f32.mrb[0].mxu0
    %v776 = vpop.f32.mrb[0].mxu0
    %v777 = vpop.f32.mrb[0].mxu0
    %778 = vdwg.mxu0
    %779 = vmatprep.subr.bf16.mxu0 0
    %780 = vmatpush1.bf16.msra.mxu0 %v603
    %781 = vmatprep.subr.bf16.mxu0 0
    %782 = vmatpush1.bf16.msra.mxu0 %v604
    %783 = vmatprep.subr.bf16.mxu0 0
    %784 = vmatpush1.bf16.msra.mxu0 %v605
    %785 = vmatprep.subr.bf16.mxu0 0
    %786 = vmatpush1.bf16.msra.mxu0 %v606
    %787 = vmatprep.subr.bf16.mxu0 0
    %788 = vmatpush1.bf16.msra.mxu0 %v607
    %789 = vmatprep.subr.bf16.mxu0 0
    %790 = vmatpush1.bf16.msra.mxu0 %v608
    %791 = vmatprep.subr.bf16.mxu0 0
    %792 = vmatpush1.bf16.msra.mxu0 %v609
    %793 = vmatprep.subr.bf16.mxu0 0
    %794 = vmatpush1.bf16.msra.mxu0 %v610
    %795 = vmatprep.subr.bf16.mxu0 0
    %796 = vmatpush1.bf16.msra.mxu0 %v611
    %797 = vmatprep.subr.bf16.mxu0 0
    %798 = vmatpush1.bf16.msra.mxu0 %v612
    %799 = vmatprep.subr.bf16.mxu0 0
    %800 = vmatpush1.bf16.msra.mxu0 %v613
    %801 = vmatprep.subr.bf16.mxu0 0
    %802 = vmatpush1.bf16.msra.mxu0 %v614
    %803 = vmatprep.subr.bf16.mxu0 0
    %804 = vmatpush1.bf16.msra.mxu0 %v615
    %805 = vmatprep.subr.bf16.mxu0 0
    %806 = vmatpush1.bf16.msra.mxu0 %v616
    %807 = vmatprep.subr.bf16.mxu0 0
    %808 = vmatpush1.bf16.msra.mxu0 %v617
    %809 = vmatprep.subr.bf16.mxu0 0
    %810 = vmatpush1.bf16.msra.mxu0 %v618
    %811 = vmatprep.mubr.bf16.mxu0 %v304
    %812 = vmatmul.mubr.bf16.gmra.mrb[0].mxu0 %v303
    %v813 = vpop.f32.mrb[0].mxu0
    %v814 = vadd.f32 %v774, %v813
    %v815 = vpop.f32.mrb[0].mxu0
    %v816 = vpop.f32.mrb[0].mxu0
    %v817 = vpop.f32.mrb[0].mxu0
    %818 = vdwg.mxu0
    %819 = vmatprep.subr.bf16.mxu0 0
    %820 = vmatpush1.bf16.msra.mxu0 %v619
    %821 = vmatprep.subr.bf16.mxu0 0
    %822 = vmatpush1.bf16.msra.mxu0 %v620
    %823 = vmatprep.subr.bf16.mxu0 0
    %824 = vmatpush1.bf16.msra.mxu0 %v621
    %825 = vmatprep.subr.bf16.mxu0 0
    %826 = vmatpush1.bf16.msra.mxu0 %v622
    %827 = vmatprep.subr.bf16.mxu0 0
    %828 = vmatpush1.bf16.msra.mxu0 %v623
    %829 = vmatprep.subr.bf16.mxu0 0
    %830 = vmatpush1.bf16.msra.mxu0 %v624
    %831 = vmatprep.subr.bf16.mxu0 0
    %832 = vmatpush1.bf16.msra.mxu0 %v625
    %833 = vmatprep.subr.bf16.mxu0 0
    %834 = vmatpush1.bf16.msra.mxu0 %v626
    %835 = vmatprep.subr.bf16.mxu0 0
    %836 = vmatpush1.bf16.msra.mxu0 %v627
    %837 = vmatprep.subr.bf16.mxu0 0
    %838 = vmatpush1.bf16.msra.mxu0 %v628
    %839 = vmatprep.subr.bf16.mxu0 0
    %840 = vmatpush1.bf16.msra.mxu0 %v629
    %841 = vmatprep.subr.bf16.mxu0 0
    %842 = vmatpush1.bf16.msra.mxu0 %v630
    %843 = vmatprep.subr.bf16.mxu0 0
    %844 = vmatpush1.bf16.msra.mxu0 %v631
    %845 = vmatprep.subr.bf16.mxu0 0
    %846 = vmatpush1.bf16.msra.mxu0 %v632
    %847 = vmatprep.subr.bf16.mxu0 0
    %848 = vmatpush1.bf16.msra.mxu0 %v633
    %849 = vmatprep.subr.bf16.mxu0 0
    %850 = vmatpush1.bf16.msra.mxu0 %v634
    %851 = vmatprep.mubr.bf16.mxu0 %v306
    %852 = vmatmul.mubr.bf16.gmra.mrb[0].mxu0 %v305
    %v853 = vpop.f32.mrb[0].mxu0
    %v854 = vadd.f32 %v814, %v853
    %v855 = vpop.f32.mrb[0].mxu0
    %v856 = vpop.f32.mrb[0].mxu0
    %v857 = vpop.f32.mrb[0].mxu0
    %858 = vdwg.mxu0
    %859 = vst [vmem:[#allocation10] sm:$0xff] %v143
    %860 = vst [vmem:[#allocation11] sm:$0xff] %v854
    %v861 = vlaneseq
    %v862 = vand.u32 %v861, 127
    %vm863 = vcmp.lt.s32.totalorder %v862, 8
    %vm864 = vcmp.gt.f32.partialorder %v143, 20.0
    %v865 = vmin.f32 %v143, 20.0
    %v866 = vmul.f32 %v865, 1.442695
    %v867 = vpow.pop %v866
    %v868 = vadd.f32 %v867, 1.0
    %v869 = vlog2.pop %v868
    %v870 = vmul.f32 %v869, 0.6931472
    %v871 = vmul.f32 -0.5, %v867
    %v872 = vadd.f32 %v871, 1.0
    %v873 = vmul.f32 %v872, %v867
    %v874 = vand.u32 2147483647, %v867
    %vm875 = vcmp.lt.f32.partialorder %v874, 0.0004427343
    %v876 = vsel %vm875, %v873, %v870
    %v877 = vsel %vm864, %v143, %v876
    %v878 = vadd.f32 %v877, 1.0
    %v879 = vsel %vm863, %v878, 0.0
    %880 = vmax.xlane.f32.xlu0 %v879
    %v881 = vpop.xlane.xlu0 %880
    %vm882 = vcmp.ge.f32.partialorder %v879, %v881
    %v883 = vsel %vm882, %v862, 128
    %v884 = vand.u32 %v883, 65535
    %v885 = vshra.s32 %v883, 16
    %v886 = vcvt.s32.f32 %v884
    %v887 = vcvt.s32.f32 %v885
    %888 = vmin.xlane.f32.xlu0 %v887
    %v889 = vpop.xlane.xlu0 %888
    %vm890 = vcmp.eq.f32.partialorder %v887, %v889
    %v891 = vsel %vm890, %v886, inf
    %892 = vmin.xlane.f32.xlu0 %v891
    %v893 = vpop.xlane.xlu0 %892
    %v894 = vcvt.f32.s32 %v893
    %v895 = vcvt.f32.s32 %v889
    %v896 = vshll.u32 %v895, 16
    %v897 = vadd.s32 %v896, %v894
    %vm898 = vcmp.eq.s32.totalorder %v862, %v897
    %v899 = vsel %vm898, -1.0, %v879
    %900 = vmax.xlane.f32.xlu0 %v899
    %v901 = vpop.xlane.xlu0 %900
    %v902 = vrcp.pop %v881
    %v903 = vmul.f32 %v901, %v902
    %vm904 = vcmp.gt.f32.partialorder %v854, 20.0
    %v905 = vmin.f32 %v854, 20.0
    %v906 = vmul.f32 %v905, 1.442695
    %v907 = vpow.pop %v906
    %v908 = vadd.f32 %v907, 1.0
    %v909 = vlog2.pop %v908
    %v910 = vmul.f32 %v909, 0.6931472
    %v911 = vmul.f32 -0.5, %v907
    %v912 = vadd.f32 %v911, 1.0
    %v913 = vmul.f32 %v912, %v907
    %v914 = vand.u32 2147483647, %v907
    %vm915 = vcmp.lt.f32.partialorder %v914, 0.0004427343
    %v916 = vsel %vm915, %v913, %v910
    %v917 = vsel %vm904, %v854, %v916
    %v918 = vadd.f32 %v917, 1.0
    %v919 = vsel %vm863, %v918, 0.0
    %920 = vmax.xlane.f32.xlu0 %v919
    %v921 = vpop.xlane.xlu0 %920
    %vm922 = vcmp.ge.f32.partialorder %v919, %v921
    %v923 = vsel %vm922, %v862, 128
    %v924 = vand.u32 %v923, 65535
    %v925 = vshra.s32 %v923, 16
    %v926 = vcvt.s32.f32 %v924
    %v927 = vcvt.s32.f32 %v925
    %928 = vmin.xlane.f32.xlu0 %v927
    %v929 = vpop.xlane.xlu0 %928
    %vm930 = vcmp.eq.f32.partialorder %v927, %v929
    %v931 = vsel %vm930, %v926, inf
    %932 = vmin.xlane.f32.xlu0 %v931
    %v933 = vpop.xlane.xlu0 %932
    %v934 = vcvt.f32.s32 %v933
    %v935 = vcvt.f32.s32 %v929
    %v936 = vshll.u32 %v935, 16
    %v937 = vadd.s32 %v936, %v934
    %vm938 = vcmp.eq.s32.totalorder %v862, %v937
    %v939 = vsel %vm938, -1.0, %v919
    %940 = vmax.xlane.f32.xlu0 %v939
    %v941 = vpop.xlane.xlu0 %940
    %v942 = vrcp.pop %v921
    %v943 = vmul.f32 %v941, %v942
    %v944 = vsub.f32 1.0, %v903
    %v945 = vsub.f32 1.0, %v943
    %v946 = vadd.f32 %v944, %v945
    %v947 = vrcp.pop %v946
    %v948 = vmul.f32 %v944, %v947
    %v949 = vmul.f32 %v143, %v948
    %v950 = vmul.f32 %v945, %v947
    %v951 = vmul.f32 %v854, %v950
    %v952 = vadd.f32 %v949, %v951
    %953 = vst [vmem:[#allocation13] sm:$0xff] %v952
    // Predicated region
    $region42: #{tpu_custom_call.1} parent=1 // pred_check
      _
    $region43: #{tpu_custom_call.1} parent=1 // pred_check_branch
      %955 = sbr.rel (0) target = $region45
    $region44: #{tpu_custom_call.1} parent=1 // pred_region
      %s957 = ssub.s32 128, 128
      %958 = vsyncadd [#allocation4], %s957
      %s960 = sshll.u32 [#allocation10], 4
      %s961 = int_to_ptr.vmem [resolvable:$true] %s960
      %963 = dma.vmem_to_hbm [thread:$0]  %s961, 128, %s6, [#allocation4]
    $region45: #{tpu_custom_call.1} parent=1 // pred_fallthru
      _
    // Predicated region
    $region46: #{tpu_custom_call.1} parent=1 // pred_check
      _
    $region47: #{tpu_custom_call.1} parent=1 // pred_check_branch
      %965 = sbr.rel (0) target = $region49
    $region48: #{tpu_custom_call.1} parent=1 // pred_region
      %s967 = ssub.s32 128, 128
      %968 = vsyncadd [#allocation12], %s967
      %s970 = sshll.u32 [#allocation11], 4
      %s971 = int_to_ptr.vmem [resolvable:$true] %s970
      %973 = dma.vmem_to_hbm [thread:$0]  %s971, 128, %s7, [#allocation12]
    $region49: #{tpu_custom_call.1} parent=1 // pred_fallthru
      _
    // Predicated region
    $region50: #{tpu_custom_call.1} parent=1 // pred_check
      _
    $region51: #{tpu_custom_call.1} parent=1 // pred_check_branch
      %975 = sbr.rel (0) target = $region53
    $region52: #{tpu_custom_call.1} parent=1 // pred_region
      %s977 = ssub.s32 128, 128
      %978 = vsyncadd [#allocation12], %s977
      %s980 = sshll.u32 [#allocation13], 4
      %s981 = int_to_ptr.vmem [resolvable:$true] %s980
      %983 = dma.vmem_to_hbm [thread:$0]  %s981, 128, %s8, [#allocation12]
    $region53: #{tpu_custom_call.1} parent=1 // pred_fallthru
      _
    // Predicated region
    $region54: #{tpu_custom_call.1} parent=1 // pred_check
      _
    $region55: #{tpu_custom_call.1} parent=1 // pred_check_branch
      %985 = sbr.rel (0) target = $region57
    $region56: #{tpu_custom_call.1} parent=1 // pred_region
      %986 = dma.done [#allocation4], 128
    $region57: #{tpu_custom_call.1} parent=1 // pred_fallthru
      _
    // Predicated region
    $region58: #{tpu_custom_call.1} parent=1 // pred_check
      _
    $region59: #{tpu_custom_call.1} parent=1 // pred_check_branch
      %988 = sbr.rel (0) target = $region61
    $region60: #{tpu_custom_call.1} parent=1 // pred_region
      %989 = dma.done [#allocation12], 128
    $region61: #{tpu_custom_call.1} parent=1 // pred_fallthru
      _
    // Predicated region
    $region62: #{tpu_custom_call.1} parent=1 // pred_check
      _
    $region63: #{tpu_custom_call.1} parent=1 // pred_check_branch
      %991 = sbr.rel (0) target = $region65
    $region64: #{tpu_custom_call.1} parent=1 // pred_region
      %992 = dma.done [#allocation12], 128
    $region65: #{tpu_custom_call.1} parent=1 // pred_fallthru
      _
    %993 = vsyncpa [#allocation3], 1
    %994 = vsyncpa [#allocation6], 1
    %995 = vsyncpa [#allocation9], 1
    %996 = vsyncpa [#allocation4], 1
    %997 = vsyncpa [#allocation12], 1

</llo_original>
